<compile_context>
chip_gen: v7x
topology: tpu7x:2x2x1
jax: 0.10.0
libtpu: 0.0.40
codegen_flags: <defaults>
</compile_context>

<pallas_src>
import jax
import jax.numpy as jnp
from jax.experimental import pallas as pl
from jax.experimental.pallas import tpu as pltpu


def _double_kernel(x_ref, o_ref):
    # a.copy_(other) then a + b (both alias the copied storage) == 2 * other.
    x = x_ref[...]
    o_ref[...] = x + x


_COLS = 1024            # lane-dense: large multiple of 128 -> unmasked vst
_MAX_BLOCK_ROWS = 512   # 512 x 1024 f32 = 2 MiB per block; in+out double-buffered = 8 MiB


def copy_model_forward(a, other):
    """Reproduces CopyModel.forward(a) with `other` as the module parameter."""
    assert a.dtype == other.dtype
    orig_shape = a.shape
    dtype = a.dtype

    # copy_ broadcasts `other` into a's shape.  For this module as specified
    # (other = torch.randn(shape) with shape == a.shape) the shapes match and
    # nothing is materialized.
    if other.shape != a.shape:
        # TODO(synk): for a genuinely-broadcast (smaller) parameter, broadcast
        # in-kernel via a repeated index_map instead of materializing in HBM.
        other = jnp.broadcast_to(other, a.shape)

    total = 1
    for d in orig_shape:
        total *= d

    itemsize = jnp.dtype(dtype).itemsize
    # Sublane alignment: 8 rows for 4-byte, 16 for 2-byte (bf16), 32 for 1-byte.
    sub = 8 * max(1, 4 // itemsize)

    # Flatten to a lane-dense (rows, _COLS) slab, padded so every block is a
    # full aligned tile and the grid divides evenly (no masked tail stores).
    rows = pl.cdiv(total, _COLS)
    rows = pl.cdiv(rows, sub) * sub
    block_rows = min(_MAX_BLOCK_ROWS, rows)
    rows = pl.cdiv(rows, block_rows) * block_rows
    padded_total = rows * _COLS

    flat = other.reshape(-1)
    if padded_total != total:
        flat = jnp.pad(flat, (0, padded_total - total))
    x2 = flat.reshape(rows, _COLS)

    grid = (rows // block_rows,)

    out2 = pl.pallas_call(
        _double_kernel,
        out_shape=jax.ShapeDtypeStruct((rows, _COLS), dtype),
        grid_spec=pltpu.PrefetchScalarGridSpec(
            num_scalar_prefetch=0,
            grid=grid,
            in_specs=[pl.BlockSpec((block_rows, _COLS), lambda i: (i, 0))],
            out_specs=pl.BlockSpec((block_rows, _COLS), lambda i: (i, 0)),
        ),
        compiler_params=pltpu.CompilerParams(
            # Independent row tiles -> both v7x TensorCores; harmless on v5e/v6e.
            dimension_semantics=("parallel",),
            vmem_limit_bytes=32 * 1024 * 1024,
        ),
    )(x2)

    out_flat = out2.reshape(-1)
    if padded_total != total:
        out_flat = out_flat[:total]
    return out_flat.reshape(orig_shape)


if __name__ == "__main__":
    key = jax.random.PRNGKey(0)
    k_a, k_other = jax.random.split(key)

    shape = (2, 4, 16, 16)  # N, C, H, W
    a = jax.random.normal(k_a, shape, dtype=jnp.float32)
    # Deterministic stand-in for the torch.randn(shape) parameter in __init__.
    other = jax.random.normal(k_other, shape, dtype=jnp.float32)

    out = copy_model_forward(a, other)
    jax.block_until_ready(out)

    # Reference: a.copy_(other); a + a  ->  2 * other
    ref = 2.0 * other
    assert out.shape == a.shape
    assert jnp.allclose(out, ref, atol=1e-6, rtol=1e-6)

    print("KERNEL_OK")
</pallas_src>

<mosaic_0001>
module attributes {stable_mosaic.version = 11 : i64} {
  func.func @_double_kernel(%arg0: i32, %arg1: memref<8x1024xf32, #tpu.memory_space<vmem>>, %arg2: memref<8x1024xf32, #tpu.memory_space<vmem>>) attributes {dimension_semantics = [#tpu.dimension_semantics<parallel>], iteration_bounds = array<i64: 1>, scalar_prefetch = 0 : i64, scratch_operands = 0 : i64, tpu.core_type = #tpu.core_type<tc>, window_params = [{transform_indices = @transform_0, window_bounds = array<i64: 8, 1024>}, {transform_indices = @transform_1, window_bounds = array<i64: 8, 1024>}]} {
    %c0 = arith.constant 0 : index
    %c0_0 = arith.constant 0 : index
    %0 = vector.load %arg1[%c0, %c0_0] : memref<8x1024xf32, #tpu.memory_space<vmem>>, vector<8x1024xf32>
    %1 = arith.addf %0, %0 : vector<8x1024xf32>
    %c0_1 = arith.constant 0 : index
    %c0_2 = arith.constant 0 : index
    %2 = vector.load %arg2[%c0_1, %c0_2] : memref<8x1024xf32, #tpu.memory_space<vmem>>, vector<8x1024xf32>
    tpu.vector_store %arg2[%c0_1, %c0_2], %1 {strides = array<i32>} : memref<8x1024xf32, #tpu.memory_space<vmem>>, vector<8x1024xf32>,
    return
  }
  func.func @transform_0(%arg0: i32) -> (i32, i32) {
    %c0_i32 = arith.constant 0 : i32
    %c0_i32_0 = arith.constant 0 : i32
    return %arg0, %c0_i32 : i32, i32
  }
  func.func @transform_1(%arg0: i32) -> (i32, i32) {
    %c0_i32 = arith.constant 0 : i32
    %c0_i32_0 = arith.constant 0 : i32
    return %arg0, %c0_i32 : i32, i32
  }
}

</mosaic_0001>

<llo_original>
// kernel: tpu_custom_call.1
$region0: #{tpu_custom_call.1}
  #allocation0 [shape = 'u32[]', space=smem, size = 0x4, offset = 0x4, fixed_abs, tag = 'smem constant byte address 0x4 - core index']
  #allocation1 [shape = 'u32[144,128]{1,0:T(1,128)}', space=vmem, size = 0x12000, scoped, tag = 'internal scratch']
  %s0 = inlined_call_operand.hbm [shape: f32[8,1024], index: 0, kind: input, shape index: {}]
  %s1 = inlined_call_operand.hbm [shape: f32[8,1024], index: 1, kind: output, shape index: {}]
  %s2 = sld [smem:[#allocation0]]
  $region18: #{tpu_custom_call.1} parent=0
    _
  %s4 = ssub.s32 1, %s2
  %s5 = scalar_select 0, %s4, %s2
  $region1: #{tpu_custom_call.1} parent=0
    #allocation2 [shape = 'u8[32768]{0}', space=vmem, size = 0x8000, scoped, tag = 'input window, operand 0, single buffered']
    #allocation3 [shape = 's32[1]{0}', space=sflag, size = 0x4, scoped, tag = 'scoped memory for tpu_custom_call.1']
    #allocation4 [shape = 's32[1]{0}', space=sflag, size = 0x4, scoped, tag = 'scoped memory for tpu_custom_call.1']
    #allocation5 [shape = 'u8[32768]{0}', space=vmem, size = 0x8000, scoped, tag = 'output window, operand 0, single buffered']
    %6 = vsyncpa [#allocation3], 0
    %7 = vsyncpa [#allocation4], 0
    // Predicated region
    $region2: #{tpu_custom_call.1} parent=1 // pred_check
      _
    $region3: #{tpu_custom_call.1} parent=1 // pred_check_branch
      %9 = sbr.rel (0) target = $region5
    $region4: #{tpu_custom_call.1} parent=1 // pred_region
      %s11 = ssub.s32 1024, 1024
      %12 = vsyncadd [#allocation3], %s11
      %s14 = sshll.u32 [#allocation2], 4
      %s15 = int_to_ptr.vmem [resolvable:$true] %s14
      %17 = dma.hbm_to_vmem [thread:$0]  %s0, 1024, %s15, [#allocation3]
    $region5: #{tpu_custom_call.1} parent=1 // pred_fallthru
      _
    // Predicated region
    $region6: #{tpu_custom_call.1} parent=1 // pred_check
      _
    $region7: #{tpu_custom_call.1} parent=1 // pred_check_branch
      %19 = sbr.rel (0) target = $region9
    $region8: #{tpu_custom_call.1} parent=1 // pred_region
      %20 = dma.done [#allocation3], 1024
    $region9: #{tpu_custom_call.1} parent=1 // pred_fallthru
      _
    %v21 = vld [vmem:[#allocation2] sm:$0xff]
    %v22 = vld [vmem:[#allocation2 + $0x8] sm:$0xff]
    %v23 = vld [vmem:[#allocation2 + $0x10] sm:$0xff]
    %v24 = vld [vmem:[#allocation2 + $0x18] sm:$0xff]
    %v25 = vld [vmem:[#allocation2 + $0x20] sm:$0xff]
    %v26 = vld [vmem:[#allocation2 + $0x28] sm:$0xff]
    %v27 = vld [vmem:[#allocation2 + $0x30] sm:$0xff]
    %v28 = vld [vmem:[#allocation2 + $0x38] sm:$0xff]
    %v29 = vadd.f32 %v21, %v21
    %v30 = vadd.f32 %v22, %v22
    %v31 = vadd.f32 %v23, %v23
    %v32 = vadd.f32 %v24, %v24
    %v33 = vadd.f32 %v25, %v25
    %v34 = vadd.f32 %v26, %v26
    %v35 = vadd.f32 %v27, %v27
    %v36 = vadd.f32 %v28, %v28
    %37 = vst [vmem:[#allocation5] sm:$0xff] %v29
    %38 = vst [vmem:[#allocation5 + $0x8] sm:$0xff] %v30
    %39 = vst [vmem:[#allocation5 + $0x10] sm:$0xff] %v31
    %40 = vst [vmem:[#allocation5 + $0x18] sm:$0xff] %v32
    %41 = vst [vmem:[#allocation5 + $0x20] sm:$0xff] %v33
    %42 = vst [vmem:[#allocation5 + $0x28] sm:$0xff] %v34
    %43 = vst [vmem:[#allocation5 + $0x30] sm:$0xff] %v35
    %44 = vst [vmem:[#allocation5 + $0x38] sm:$0xff] %v36
    // Predicated region
    $region10: #{tpu_custom_call.1} parent=1 // pred_check
      _
    $region11: #{tpu_custom_call.1} parent=1 // pred_check_branch
      %46 = sbr.rel (0) target = $region13
    $region12: #{tpu_custom_call.1} parent=1 // pred_region
      %s48 = ssub.s32 1024, 1024
      %49 = vsyncadd [#allocation4], %s48
      %s51 = sshll.u32 [#allocation5], 4
      %s52 = int_to_ptr.vmem [resolvable:$true] %s51
      %54 = dma.vmem_to_hbm [thread:$0]  %s52, 1024, %s1, [#allocation4]
    $region13: #{tpu_custom_call.1} parent=1 // pred_fallthru
      _
    // Predicated region
    $region14: #{tpu_custom_call.1} parent=1 // pred_check
      _
    $region15: #{tpu_custom_call.1} parent=1 // pred_check_branch
      %56 = sbr.rel (0) target = $region17
    $region16: #{tpu_custom_call.1} parent=1 // pred_region
      %57 = dma.done [#allocation4], 1024
    $region17: #{tpu_custom_call.1} parent=1 // pred_fallthru
      _
    %58 = vsyncpa [#allocation3], 1
    %59 = vsyncpa [#allocation4], 1

</llo_original>
